<compile_context>
chip_gen: v7x
topology: tpu7x:2x2x1
jax: 0.10.0
libtpu: 0.0.40
codegen_flags: <defaults>
</compile_context>

<pallas_src>
import jax
import jax.numpy as jnp
from jax.experimental import pallas as pl
from jax.experimental.pallas import tpu as pltpu


def _round_up(n, m):
    return ((n + m - 1) // m) * m


def _atom_encoder_kernel(x_ref, emb_ref, out_ref):
    # x_ref   : (TN, F)        int32      one tile of atoms
    # emb_ref : (F * Vp, Hp)   bf16/f32   all tables flattened, VMEM-resident
    # out_ref : (TN, Hp)       float32
    tn, f = x_ref.shape
    fvp, _ = emb_ref.shape
    vp = fvp // f

    # Per-feature one-hot over the padded vocab, concatenated along lanes into
    # a single (TN, F*Vp) operand so the F lookups become one MXU contraction.
    vocab_iota = jax.lax.broadcasted_iota(jnp.int32, (tn, vp), 1)
    parts = []
    for i in range(f):                                   # static unroll, F <= 9
        idx = x_ref[:, i:i + 1]                          # (TN, 1) int32
        parts.append((idx == vocab_iota).astype(emb_ref.dtype))
    one_hot = jnp.concatenate(parts, axis=-1)            # (TN, F*Vp)

    # Single fused matmul, f32 accumulation in the MXU.
    out_ref[...] = jnp.dot(one_hot, emb_ref[...],
                           preferred_element_type=jnp.float32)


def atom_encoder_forward(x, emb_tables, *, tile_n=256):
    """Pallas equivalent of AtomEncoder.forward.

    x          : int array [N] or [N, F] with values in [0, 100)
    emb_tables : float [num_tables, 100, H]  (bf16 recommended, f32 also fine)
    returns    : float32 [N, H]
    """
    if x.ndim == 1:
        x = x[:, None]
    x = x.astype(jnp.int32)
    n, f = x.shape
    n_tables, v, h = emb_tables.shape
    assert f <= n_tables, "more features than embedding tables"

    # --- pad vocab -> 128 and hidden -> multiple of 128 (lane-dense) --------
    vp = _round_up(v, 128)
    hp = _round_up(h, 128)
    tables = emb_tables[:f]
    tables = jnp.pad(tables, ((0, 0), (0, vp - v), (0, hp - h)))
    tables_2d = tables.reshape(f * vp, hp)               # (F*Vp, Hp)

    # --- tile the atom axis; pad N so every tile is full --------------------
    tn = _round_up(min(tile_n, _round_up(n, 8)), 8)
    n_pad = _round_up(n, tn)
    if n_pad != n:
        # padded rows look up index 0 (valid); sliced off below
        x = jnp.pad(x, ((0, n_pad - n), (0, 0)))

    out = pl.pallas_call(
        _atom_encoder_kernel,
        out_shape=jax.ShapeDtypeStruct((n_pad, hp), jnp.float32),
        grid_spec=pltpu.PrefetchScalarGridSpec(
            num_scalar_prefetch=0,
            grid=(n_pad // tn,),
            in_specs=[
                pl.BlockSpec((tn, f), lambda i: (i, 0)),        # x tile
                pl.BlockSpec((f * vp, hp), lambda i: (0, 0)),   # tables, resident
            ],
            out_specs=pl.BlockSpec((tn, hp), lambda i: (i, 0)),
        ),
        compiler_params=pltpu.CompilerParams(
            dimension_semantics=("parallel",)),
    )(x, tables_2d)

    return out[:n, :h]


def init_atom_encoder_params(hidden_channels, key, dtype=jnp.bfloat16):
    # torch.nn.Embedding default init: N(0, 1); stored bf16 (MXU-native)
    keys = jax.random.split(key, 9)
    tables = [jax.random.normal(k, (100, hidden_channels), dtype=jnp.float32)
              for k in keys]
    return jnp.stack(tables, axis=0).astype(dtype)        # [9, 100, H]


def _reference(x, emb_tables):
    tables_f32 = emb_tables.astype(jnp.float32)
    n, f = x.shape
    ref = jnp.zeros((n, tables_f32.shape[-1]), jnp.float32)
    for i in range(f):
        ref = ref + tables_f32[i][x[:, i]]
    return ref


if __name__ == "__main__":
    key = jax.random.PRNGKey(0)
    k_param, k_x1, k_x2 = jax.random.split(key, 3)

    hidden_channels = 32
    num_features = 9
    emb_tables = init_atom_encoder_params(hidden_channels, k_param)  # bf16

    # small case: single tile
    x1 = jax.random.randint(k_x1, (16, num_features), 0, 100, dtype=jnp.int32)
    out1 = jax.block_until_ready(atom_encoder_forward(x1, emb_tables))
    ref1 = _reference(x1, emb_tables)
    assert out1.shape == (16, hidden_channels) and out1.dtype == jnp.float32
    assert jnp.allclose(out1, ref1, atol=1e-4, rtol=1e-4)

    # multi-tile case with a ragged tail (exercises grid + N padding)
    x2 = jax.random.randint(k_x2, (300, num_features), 0, 100, dtype=jnp.int32)
    out2 = jax.block_until_ready(atom_encoder_forward(x2, emb_tables, tile_n=128))
    ref2 = _reference(x2, emb_tables)
    assert out2.shape == (300, hidden_channels)
    assert jnp.allclose(out2, ref2, atol=1e-4, rtol=1e-4)

    print("KERNEL_OK")
</pallas_src>

<mosaic_0001>
module attributes {stable_mosaic.version = 11 : i64} {
  func.func @_atom_encoder_kernel(%arg0: i32, %arg1: memref<16x9xi32, #tpu.memory_space<vmem>>, %arg2: memref<1152x128xbf16, #tpu.memory_space<vmem>>, %arg3: memref<16x128xf32, #tpu.memory_space<vmem>>) attributes {dimension_semantics = [#tpu.dimension_semantics<parallel>], iteration_bounds = array<i64: 1>, scalar_prefetch = 0 : i64, scratch_operands = 0 : i64, tpu.core_type = #tpu.core_type<tc>, window_params = [{transform_indices = @transform_0, window_bounds = array<i64: 16, 9>}, {pipeline_mode = #tpu.pipeline_mode<synchronous>, transform_indices = @transform_1, window_bounds = array<i64: 1152, 128>}, {transform_indices = @transform_2, window_bounds = array<i64: 16, 128>}]} {
    %0 = tpu.iota {dimensions = array<i32: 1>} : vector<16x128xi32>
    %c0 = arith.constant 0 : index
    %c0_0 = arith.constant 0 : index
    %1 = vector.load %arg1[%c0, %c0_0] : memref<16x9xi32, #tpu.memory_space<vmem>>, vector<16x1xi32>
    %2 = vector.broadcast %1 : vector<16x1xi32> to vector<16x128xi32>
    %3 = arith.cmpi eq, %2, %0 : vector<16x128xi32>
    %4 = arith.extui %3 : vector<16x128xi1> to vector<16x128xi32>
    %5 = arith.sitofp %4 : vector<16x128xi32> to vector<16x128xf32>
    %6 = arith.truncf %5 : vector<16x128xf32> to vector<16x128xbf16>
    %c0_1 = arith.constant 0 : index
    %c1 = arith.constant 1 : index
    %7 = vector.load %arg1[%c0_1, %c1] : memref<16x9xi32, #tpu.memory_space<vmem>>, vector<16x1xi32>
    %8 = vector.broadcast %7 : vector<16x1xi32> to vector<16x128xi32>
    %9 = arith.cmpi eq, %8, %0 : vector<16x128xi32>
    %10 = arith.extui %9 : vector<16x128xi1> to vector<16x128xi32>
    %11 = arith.sitofp %10 : vector<16x128xi32> to vector<16x128xf32>
    %12 = arith.truncf %11 : vector<16x128xf32> to vector<16x128xbf16>
    %c0_2 = arith.constant 0 : index
    %c2 = arith.constant 2 : index
    %13 = vector.load %arg1[%c0_2, %c2] : memref<16x9xi32, #tpu.memory_space<vmem>>, vector<16x1xi32>
    %14 = vector.broadcast %13 : vector<16x1xi32> to vector<16x128xi32>
    %15 = arith.cmpi eq, %14, %0 : vector<16x128xi32>
    %16 = arith.extui %15 : vector<16x128xi1> to vector<16x128xi32>
    %17 = arith.sitofp %16 : vector<16x128xi32> to vector<16x128xf32>
    %18 = arith.truncf %17 : vector<16x128xf32> to vector<16x128xbf16>
    %c0_3 = arith.constant 0 : index
    %c3 = arith.constant 3 : index
    %19 = vector.load %arg1[%c0_3, %c3] : memref<16x9xi32, #tpu.memory_space<vmem>>, vector<16x1xi32>
    %20 = vector.broadcast %19 : vector<16x1xi32> to vector<16x128xi32>
    %21 = arith.cmpi eq, %20, %0 : vector<16x128xi32>
    %22 = arith.extui %21 : vector<16x128xi1> to vector<16x128xi32>
    %23 = arith.sitofp %22 : vector<16x128xi32> to vector<16x128xf32>
    %24 = arith.truncf %23 : vector<16x128xf32> to vector<16x128xbf16>
    %c0_4 = arith.constant 0 : index
    %c4 = arith.constant 4 : index
    %25 = vector.load %arg1[%c0_4, %c4] : memref<16x9xi32, #tpu.memory_space<vmem>>, vector<16x1xi32>
    %26 = vector.broadcast %25 : vector<16x1xi32> to vector<16x128xi32>
    %27 = arith.cmpi eq, %26, %0 : vector<16x128xi32>
    %28 = arith.extui %27 : vector<16x128xi1> to vector<16x128xi32>
    %29 = arith.sitofp %28 : vector<16x128xi32> to vector<16x128xf32>
    %30 = arith.truncf %29 : vector<16x128xf32> to vector<16x128xbf16>
    %c0_5 = arith.constant 0 : index
    %c5 = arith.constant 5 : index
    %31 = vector.load %arg1[%c0_5, %c5] : memref<16x9xi32, #tpu.memory_space<vmem>>, vector<16x1xi32>
    %32 = vector.broadcast %31 : vector<16x1xi32> to vector<16x128xi32>
    %33 = arith.cmpi eq, %32, %0 : vector<16x128xi32>
    %34 = arith.extui %33 : vector<16x128xi1> to vector<16x128xi32>
    %35 = arith.sitofp %34 : vector<16x128xi32> to vector<16x128xf32>
    %36 = arith.truncf %35 : vector<16x128xf32> to vector<16x128xbf16>
    %c0_6 = arith.constant 0 : index
    %c6 = arith.constant 6 : index
    %37 = vector.load %arg1[%c0_6, %c6] : memref<16x9xi32, #tpu.memory_space<vmem>>, vector<16x1xi32>
    %38 = vector.broadcast %37 : vector<16x1xi32> to vector<16x128xi32>
    %39 = arith.cmpi eq, %38, %0 : vector<16x128xi32>
    %40 = arith.extui %39 : vector<16x128xi1> to vector<16x128xi32>
    %41 = arith.sitofp %40 : vector<16x128xi32> to vector<16x128xf32>
    %42 = arith.truncf %41 : vector<16x128xf32> to vector<16x128xbf16>
    %c0_7 = arith.constant 0 : index
    %c7 = arith.constant 7 : index
    %43 = vector.load %arg1[%c0_7, %c7] : memref<16x9xi32, #tpu.memory_space<vmem>>, vector<16x1xi32>
    %44 = vector.broadcast %43 : vector<16x1xi32> to vector<16x128xi32>
    %45 = arith.cmpi eq, %44, %0 : vector<16x128xi32>
    %46 = arith.extui %45 : vector<16x128xi1> to vector<16x128xi32>
    %47 = arith.sitofp %46 : vector<16x128xi32> to vector<16x128xf32>
    %48 = arith.truncf %47 : vector<16x128xf32> to vector<16x128xbf16>
    %c0_8 = arith.constant 0 : index
    %c8 = arith.constant 8 : index
    %49 = vector.load %arg1[%c0_8, %c8] : memref<16x9xi32, #tpu.memory_space<vmem>>, vector<16x1xi32>
    %50 = vector.broadcast %49 : vector<16x1xi32> to vector<16x128xi32>
    %51 = arith.cmpi eq, %50, %0 : vector<16x128xi32>
    %52 = arith.extui %51 : vector<16x128xi1> to vector<16x128xi32>
    %53 = arith.sitofp %52 : vector<16x128xi32> to vector<16x128xf32>
    %54 = arith.truncf %53 : vector<16x128xf32> to vector<16x128xbf16>
    %55 = tpu.concatenate %6, %12, %18, %24, %30, %36, %42, %48, %54 in 1 : vector<16x128xbf16>, vector<16x128xbf16>, vector<16x128xbf16>, vector<16x128xbf16>, vector<16x128xbf16>, vector<16x128xbf16>, vector<16x128xbf16>, vector<16x128xbf16>, vector<16x128xbf16> -> vector<16x1152xbf16>
    %c0_9 = arith.constant 0 : index
    %c0_10 = arith.constant 0 : index
    %56 = vector.load %arg2[%c0_9, %c0_10] : memref<1152x128xbf16, #tpu.memory_space<vmem>>, vector<1152x128xbf16>
    %cst = arith.constant dense<0.000000e+00> : vector<16x128xf32>
    %57 = tpu.matmul %55, %56, %cst {dimension_numbers = #tpu.dot_dimension_numbers<[1], [0], [0], [1], [0, 0, 1, 1], [], []>} : vector<16x1152xbf16>, vector<1152x128xbf16>, vector<16x128xf32> -> vector<16x128xf32>
    %c0_11 = arith.constant 0 : index
    %c0_12 = arith.constant 0 : index
    %58 = vector.load %arg3[%c0_11, %c0_12] : memref<16x128xf32, #tpu.memory_space<vmem>>, vector<16x128xf32>
    tpu.vector_store %arg3[%c0_11, %c0_12], %57 {strides = array<i32>} : memref<16x128xf32, #tpu.memory_space<vmem>>, vector<16x128xf32>,
    return
  }
  func.func @transform_0(%arg0: i32) -> (i32, i32) {
    %c0_i32 = arith.constant 0 : i32
    %c0_i32_0 = arith.constant 0 : i32
    return %arg0, %c0_i32 : i32, i32
  }
  func.func @transform_1(%arg0: i32) -> (i32, i32) {
    %c0_i32 = arith.constant 0 : i32
    %c0_i32_0 = arith.constant 0 : i32
    %c0_i32_1 = arith.constant 0 : i32
    return %c0_i32, %c0_i32_0 : i32, i32
  }
  func.func @transform_2(%arg0: i32) -> (i32, i32) {
    %c0_i32 = arith.constant 0 : i32
    %c0_i32_0 = arith.constant 0 : i32
    return %arg0, %c0_i32 : i32, i32
  }
}

</mosaic_0001>

<llo_original>
// kernel: tpu_custom_call.1
$region0: #{tpu_custom_call.1}
  #allocation0 [shape = 'u32[]', space=smem, size = 0x4, offset = 0x4, fixed_abs, tag = 'smem constant byte address 0x4 - core index']
  #allocation1 [shape = 'u32[144,128]{1,0:T(1,128)}', space=vmem, size = 0x12000, scoped, tag = 'internal scratch']
  %s0 = inlined_call_operand.hbm [shape: s32[16,9], index: 0, kind: input, shape index: {}]
  %s1 = inlined_call_operand.hbm [shape: bf16[1152,128], index: 1, kind: input, shape index: {}]
  %s2 = inlined_call_operand.hbm [shape: f32[16,128], index: 2, kind: output, shape index: {}]
  %s3 = sld [smem:[#allocation0]]
  $region26: #{tpu_custom_call.1} parent=0
    _
  %s5 = ssub.s32 1, %s3
  %s6 = scalar_select 0, %s5, %s3
  $region1: #{tpu_custom_call.1} parent=0
    #allocation2 [shape = 'u8[8192]{0}', space=vmem, size = 0x2000, scoped, tag = 'input window, operand 0, single buffered']
    #allocation3 [shape = 's32[1]{0}', space=sflag, size = 0x4, scoped, tag = 'scoped memory for tpu_custom_call.1']
    #allocation4 [shape = 's32[1]{0}', space=sflag, size = 0x4, scoped, tag = 'scoped memory for tpu_custom_call.1']
    #allocation5 [shape = 'u8[294912]{0}', space=vmem, size = 0x48000, scoped, tag = 'input window, operand 1, single buffered']
    #allocation6 [shape = 's32[1]{0}', space=sflag, size = 0x4, scoped, tag = 'scoped memory for tpu_custom_call.1']
    #allocation7 [shape = 'u8[8192]{0}', space=vmem, size = 0x2000, scoped, tag = 'output window, operand 0, single buffered']
    %7 = vsyncpa [#allocation3], 0
    %8 = vsyncpa [#allocation6], 0
    %9 = vsyncpa [#allocation4], 0
    // Predicated region
    $region2: #{tpu_custom_call.1} parent=1 // pred_check
      _
    $region3: #{tpu_custom_call.1} parent=1 // pred_check_branch
      %11 = sbr.rel (0) target = $region5
    $region4: #{tpu_custom_call.1} parent=1 // pred_region
      %s13 = ssub.s32 256, 256
      %14 = vsyncadd [#allocation3], %s13
      %s15 = sshll.u32 [#allocation2], 4
      %s16 = int_to_ptr.vmem [resolvable:$true] %s15
      %21 = dma.hbm_to_vmem [thread:$0]  %s0, 256, %s16, [#allocation3], 128, 128, 8
    $region5: #{tpu_custom_call.1} parent=1 // pred_fallthru
      _
    // Predicated region
    $region6: #{tpu_custom_call.1} parent=1 // pred_check
      _
    $region7: #{tpu_custom_call.1} parent=1 // pred_check_branch
      %23 = sbr.rel (0) target = $region9
    $region8: #{tpu_custom_call.1} parent=1 // pred_region
      %s25 = ssub.s32 9216, 9216
      %26 = vsyncadd [#allocation6], %s25
      %s27 = sshll.u32 [#allocation5], 4
      %s28 = int_to_ptr.vmem [resolvable:$true] %s27
      %33 = dma.hbm_to_vmem [thread:$0]  %s1, 9216, %s28, [#allocation6], 64, 64, 4
    $region9: #{tpu_custom_call.1} parent=1 // pred_fallthru
      _
    // Predicated region
    $region10: #{tpu_custom_call.1} parent=1 // pred_check
      _
    $region11: #{tpu_custom_call.1} parent=1 // pred_check_branch
      %35 = sbr.rel (0) target = $region13
    $region12: #{tpu_custom_call.1} parent=1 // pred_region
      %36 = dma.done [#allocation3], 256
    $region13: #{tpu_custom_call.1} parent=1 // pred_fallthru
      _
    // Predicated region
    $region14: #{tpu_custom_call.1} parent=1 // pred_check
      _
    $region15: #{tpu_custom_call.1} parent=1 // pred_check_branch
      %38 = sbr.rel (0) target = $region17
    $region16: #{tpu_custom_call.1} parent=1 // pred_region
      %39 = dma.done [#allocation6], 9216
    $region17: #{tpu_custom_call.1} parent=1 // pred_fallthru
      _
    %v41 = vlaneseq
    %v42 = vand.u32 %v41, 127
    %v43 = vld [vmem:[#allocation2] sm:$0xff]
    %v44 = vld [vmem:[#allocation2 + $0x8] sm:$0xff]
    %45 = vset.pattern.permute.xlu0 0
    %46 = vperm.xlu0 %45, %v43
    %v47 = vpop.permute.xlu0 %46
    %48 = vset.pattern.permute.xlu0 0
    %49 = vperm.xlu0 %48, %v44
    %v50 = vpop.permute.xlu0 %49
    %vm51 = vcmp.eq.s32.totalorder %v47, %v42
    %vm52 = vcmp.eq.s32.totalorder %v50, %v42
    %v53 = vsel %vm51, 1, 0
    %v54 = vsel %vm52, 1, 0
    %v55 = vcvt.s32.f32 %v53
    %v56 = vcvt.s32.f32 %v54
    %v57 = vpack.c.bf16 %v56, %v55
    %58 = vset.pattern.permute.xlu0 1
    %59 = vperm.xlu0 %58, %v43
    %v60 = vpop.permute.xlu0 %59
    %61 = vset.pattern.permute.xlu0 1
    %62 = vperm.xlu0 %61, %v44
    %v63 = vpop.permute.xlu0 %62
    %vm64 = vcmp.eq.s32.totalorder %v60, %v42
    %vm65 = vcmp.eq.s32.totalorder %v63, %v42
    %v66 = vsel %vm64, 1, 0
    %v67 = vsel %vm65, 1, 0
    %v68 = vcvt.s32.f32 %v66
    %v69 = vcvt.s32.f32 %v67
    %v70 = vpack.c.bf16 %v69, %v68
    %71 = vset.pattern.permute.xlu0 2
    %72 = vperm.xlu0 %71, %v43
    %v73 = vpop.permute.xlu0 %72
    %74 = vset.pattern.permute.xlu0 2
    %75 = vperm.xlu0 %74, %v44
    %v76 = vpop.permute.xlu0 %75
    %vm77 = vcmp.eq.s32.totalorder %v73, %v42
    %vm78 = vcmp.eq.s32.totalorder %v76, %v42
    %v79 = vsel %vm77, 1, 0
    %v80 = vsel %vm78, 1, 0
    %v81 = vcvt.s32.f32 %v79
    %v82 = vcvt.s32.f32 %v80
    %v83 = vpack.c.bf16 %v82, %v81
    %84 = vset.pattern.permute.xlu0 3
    %85 = vperm.xlu0 %84, %v43
    %v86 = vpop.permute.xlu0 %85
    %87 = vset.pattern.permute.xlu0 3
    %88 = vperm.xlu0 %87, %v44
    %v89 = vpop.permute.xlu0 %88
    %vm90 = vcmp.eq.s32.totalorder %v86, %v42
    %vm91 = vcmp.eq.s32.totalorder %v89, %v42
    %v92 = vsel %vm90, 1, 0
    %v93 = vsel %vm91, 1, 0
    %v94 = vcvt.s32.f32 %v92
    %v95 = vcvt.s32.f32 %v93
    %v96 = vpack.c.bf16 %v95, %v94
    %97 = vset.pattern.permute.xlu0 4
    %98 = vperm.xlu0 %97, %v43
    %v99 = vpop.permute.xlu0 %98
    %100 = vset.pattern.permute.xlu0 4
    %101 = vperm.xlu0 %100, %v44
    %v102 = vpop.permute.xlu0 %101
    %vm103 = vcmp.eq.s32.totalorder %v99, %v42
    %vm104 = vcmp.eq.s32.totalorder %v102, %v42
    %v105 = vsel %vm103, 1, 0
    %v106 = vsel %vm104, 1, 0
    %v107 = vcvt.s32.f32 %v105
    %v108 = vcvt.s32.f32 %v106
    %v109 = vpack.c.bf16 %v108, %v107
    %110 = vset.pattern.permute.xlu0 5
    %111 = vperm.xlu0 %110, %v43
    %v112 = vpop.permute.xlu0 %111
    %113 = vset.pattern.permute.xlu0 5
    %114 = vperm.xlu0 %113, %v44
    %v115 = vpop.permute.xlu0 %114
    %vm116 = vcmp.eq.s32.totalorder %v112, %v42
    %vm117 = vcmp.eq.s32.totalorder %v115, %v42
    %v118 = vsel %vm116, 1, 0
    %v119 = vsel %vm117, 1, 0
    %v120 = vcvt.s32.f32 %v118
    %v121 = vcvt.s32.f32 %v119
    %v122 = vpack.c.bf16 %v121, %v120
    %123 = vset.pattern.permute.xlu0 6
    %124 = vperm.xlu0 %123, %v43
    %v125 = vpop.permute.xlu0 %124
    %126 = vset.pattern.permute.xlu0 6
    %127 = vperm.xlu0 %126, %v44
    %v128 = vpop.permute.xlu0 %127
    %vm129 = vcmp.eq.s32.totalorder %v125, %v42
    %vm130 = vcmp.eq.s32.totalorder %v128, %v42
    %v131 = vsel %vm129, 1, 0
    %v132 = vsel %vm130, 1, 0
    %v133 = vcvt.s32.f32 %v131
    %v134 = vcvt.s32.f32 %v132
    %v135 = vpack.c.bf16 %v134, %v133
    %136 = vset.pattern.permute.xlu0 7
    %137 = vperm.xlu0 %136, %v43
    %v138 = vpop.permute.xlu0 %137
    %139 = vset.pattern.permute.xlu0 7
    %140 = vperm.xlu0 %139, %v44
    %v141 = vpop.permute.xlu0 %140
    %vm142 = vcmp.eq.s32.totalorder %v138, %v42
    %vm143 = vcmp.eq.s32.totalorder %v141, %v42
    %v144 = vsel %vm142, 1, 0
    %v145 = vsel %vm143, 1, 0
    %v146 = vcvt.s32.f32 %v144
    %v147 = vcvt.s32.f32 %v145
    %v148 = vpack.c.bf16 %v147, %v146
    %149 = vset.pattern.permute.xlu0 8
    %150 = vperm.xlu0 %149, %v43
    %v151 = vpop.permute.xlu0 %150
    %152 = vset.pattern.permute.xlu0 8
    %153 = vperm.xlu0 %152, %v44
    %v154 = vpop.permute.xlu0 %153
    %vm155 = vcmp.eq.s32.totalorder %v151, %v42
    %vm156 = vcmp.eq.s32.totalorder %v154, %v42
    %v157 = vsel %vm155, 1, 0
    %v158 = vsel %vm156, 1, 0
    %v159 = vcvt.s32.f32 %v157
    %v160 = vcvt.s32.f32 %v158
    %v161 = vpack.c.bf16 %v160, %v159
    %v162 = vld [vmem:[#allocation5] sm:$0xf]
    %v163 = vld [vmem:[#allocation5 + $0x4] sm:$0xf]
    %v164 = vld [vmem:[#allocation5 + $0x8] sm:$0xf]
    %v165 = vld [vmem:[#allocation5 + $0xc] sm:$0xf]
    %v166 = vld [vmem:[#allocation5 + $0x10] sm:$0xf]
    %v167 = vld [vmem:[#allocation5 + $0x14] sm:$0xf]
    %v168 = vld [vmem:[#allocation5 + $0x18] sm:$0xf]
    %v169 = vld [vmem:[#allocation5 + $0x1c] sm:$0xf]
    %v170 = vld [vmem:[#allocation5 + $0x20] sm:$0xf]
    %v171 = vld [vmem:[#allocation5 + $0x24] sm:$0xf]
    %v172 = vld [vmem:[#allocation5 + $0x28] sm:$0xf]
    %v173 = vld [vmem:[#allocation5 + $0x2c] sm:$0xf]
    %v174 = vld [vmem:[#allocation5 + $0x30] sm:$0xf]
    %v175 = vld [vmem:[#allocation5 + $0x34] sm:$0xf]
    %v176 = vld [vmem:[#allocation5 + $0x38] sm:$0xf]
    %v177 = vld [vmem:[#allocation5 + $0x3c] sm:$0xf]
    %v178 = vld [vmem:[#allocation5 + $0x40] sm:$0xf]
    %v179 = vld [vmem:[#allocation5 + $0x44] sm:$0xf]
    %v180 = vld [vmem:[#allocation5 + $0x48] sm:$0xf]
    %v181 = vld [vmem:[#allocation5 + $0x4c] sm:$0xf]
    %v182 = vld [vmem:[#allocation5 + $0x50] sm:$0xf]
    %v183 = vld [vmem:[#allocation5 + $0x54] sm:$0xf]
    %v184 = vld [vmem:[#allocation5 + $0x58] sm:$0xf]
    %v185 = vld [vmem:[#allocation5 + $0x5c] sm:$0xf]
    %v186 = vld [vmem:[#allocation5 + $0x60] sm:$0xf]
    %v187 = vld [vmem:[#allocation5 + $0x64] sm:$0xf]
    %v188 = vld [vmem:[#allocation5 + $0x68] sm:$0xf]
    %v189 = vld [vmem:[#allocation5 + $0x6c] sm:$0xf]
    %v190 = vld [vmem:[#allocation5 + $0x70] sm:$0xf]
    %v191 = vld [vmem:[#allocation5 + $0x74] sm:$0xf]
    %v192 = vld [vmem:[#allocation5 + $0x78] sm:$0xf]
    %v193 = vld [vmem:[#allocation5 + $0x7c] sm:$0xf]
    %v194 = vld [vmem:[#allocation5 + $0x80] sm:$0xf]
    %v195 = vld [vmem:[#allocation5 + $0x84] sm:$0xf]
    %v196 = vld [vmem:[#allocation5 + $0x88] sm:$0xf]
    %v197 = vld [vmem:[#allocation5 + $0x8c] sm:$0xf]
    %v198 = vld [vmem:[#allocation5 + $0x90] sm:$0xf]
    %v199 = vld [vmem:[#allocation5 + $0x94] sm:$0xf]
    %v200 = vld [vmem:[#allocation5 + $0x98] sm:$0xf]
    %v201 = vld [vmem:[#allocation5 + $0x9c] sm:$0xf]
    %v202 = vld [vmem:[#allocation5 + $0xa0] sm:$0xf]
    %v203 = vld [vmem:[#allocation5 + $0xa4] sm:$0xf]
    %v204 = vld [vmem:[#allocation5 + $0xa8] sm:$0xf]
    %v205 = vld [vmem:[#allocation5 + $0xac] sm:$0xf]
    %v206 = vld [vmem:[#allocation5 + $0xb0] sm:$0xf]
    %v207 = vld [vmem:[#allocation5 + $0xb4] sm:$0xf]
    %v208 = vld [vmem:[#allocation5 + $0xb8] sm:$0xf]
    %v209 = vld [vmem:[#allocation5 + $0xbc] sm:$0xf]
    %v210 = vld [vmem:[#allocation5 + $0xc0] sm:$0xf]
    %v211 = vld [vmem:[#allocation5 + $0xc4] sm:$0xf]
    %v212 = vld [vmem:[#allocation5 + $0xc8] sm:$0xf]
    %v213 = vld [vmem:[#allocation5 + $0xcc] sm:$0xf]
    %v214 = vld [vmem:[#allocation5 + $0xd0] sm:$0xf]
    %v215 = vld [vmem:[#allocation5 + $0xd4] sm:$0xf]
    %v216 = vld [vmem:[#allocation5 + $0xd8] sm:$0xf]
    %v217 = vld [vmem:[#allocation5 + $0xdc] sm:$0xf]
    %v218 = vld [vmem:[#allocation5 + $0xe0] sm:$0xf]
    %v219 = vld [vmem:[#allocation5 + $0xe4] sm:$0xf]
    %v220 = vld [vmem:[#allocation5 + $0xe8] sm:$0xf]
    %v221 = vld [vmem:[#allocation5 + $0xec] sm:$0xf]
    %v222 = vld [vmem:[#allocation5 + $0xf0] sm:$0xf]
    %v223 = vld [vmem:[#allocation5 + $0xf4] sm:$0xf]
    %v224 = vld [vmem:[#allocation5 + $0xf8] sm:$0xf]
    %v225 = vld [vmem:[#allocation5 + $0xfc] sm:$0xf]
    %v226 = vld [vmem:[#allocation5 + $0x100] sm:$0xf]
    %v227 = vld [vmem:[#allocation5 + $0x104] sm:$0xf]
    %v228 = vld [vmem:[#allocation5 + $0x108] sm:$0xf]
    %v229 = vld [vmem:[#allocation5 + $0x10c] sm:$0xf]
    %v230 = vld [vmem:[#allocation5 + $0x110] sm:$0xf]
    %v231 = vld [vmem:[#allocation5 + $0x114] sm:$0xf]
    %v232 = vld [vmem:[#allocation5 + $0x118] sm:$0xf]
    %v233 = vld [vmem:[#allocation5 + $0x11c] sm:$0xf]
    %v234 = vld [vmem:[#allocation5 + $0x120] sm:$0xf]
    %v235 = vld [vmem:[#allocation5 + $0x124] sm:$0xf]
    %v236 = vld [vmem:[#allocation5 + $0x128] sm:$0xf]
    %v237 = vld [vmem:[#allocation5 + $0x12c] sm:$0xf]
    %v238 = vld [vmem:[#allocation5 + $0x130] sm:$0xf]
    %v239 = vld [vmem:[#allocation5 + $0x134] sm:$0xf]
    %v240 = vld [vmem:[#allocation5 + $0x138] sm:$0xf]
    %v241 = vld [vmem:[#allocation5 + $0x13c] sm:$0xf]
    %v242 = vld [vmem:[#allocation5 + $0x140] sm:$0xf]
    %v243 = vld [vmem:[#allocation5 + $0x144] sm:$0xf]
    %v244 = vld [vmem:[#allocation5 + $0x148] sm:$0xf]
    %v245 = vld [vmem:[#allocation5 + $0x14c] sm:$0xf]
    %v246 = vld [vmem:[#allocation5 + $0x150] sm:$0xf]
    %v247 = vld [vmem:[#allocation5 + $0x154] sm:$0xf]
    %v248 = vld [vmem:[#allocation5 + $0x158] sm:$0xf]
    %v249 = vld [vmem:[#allocation5 + $0x15c] sm:$0xf]
    %v250 = vld [vmem:[#allocation5 + $0x160] sm:$0xf]
    %v251 = vld [vmem:[#allocation5 + $0x164] sm:$0xf]
    %v252 = vld [vmem:[#allocation5 + $0x168] sm:$0xf]
    %v253 = vld [vmem:[#allocation5 + $0x16c] sm:$0xf]
    %v254 = vld [vmem:[#allocation5 + $0x170] sm:$0xf]
    %v255 = vld [vmem:[#allocation5 + $0x174] sm:$0xf]
    %v256 = vld [vmem:[#allocation5 + $0x178] sm:$0xf]
    %v257 = vld [vmem:[#allocation5 + $0x17c] sm:$0xf]
    %v258 = vld [vmem:[#allocation5 + $0x180] sm:$0xf]
    %v259 = vld [vmem:[#allocation5 + $0x184] sm:$0xf]
    %v260 = vld [vmem:[#allocation5 + $0x188] sm:$0xf]
    %v261 = vld [vmem:[#allocation5 + $0x18c] sm:$0xf]
    %v262 = vld [vmem:[#allocation5 + $0x190] sm:$0xf]
    %v263 = vld [vmem:[#allocation5 + $0x194] sm:$0xf]
    %v264 = vld [vmem:[#allocation5 + $0x198] sm:$0xf]
    %v265 = vld [vmem:[#allocation5 + $0x19c] sm:$0xf]
    %v266 = vld [vmem:[#allocation5 + $0x1a0] sm:$0xf]
    %v267 = vld [vmem:[#allocation5 + $0x1a4] sm:$0xf]
    %v268 = vld [vmem:[#allocation5 + $0x1a8] sm:$0xf]
    %v269 = vld [vmem:[#allocation5 + $0x1ac] sm:$0xf]
    %v270 = vld [vmem:[#allocation5 + $0x1b0] sm:$0xf]
    %v271 = vld [vmem:[#allocation5 + $0x1b4] sm:$0xf]
    %v272 = vld [vmem:[#allocation5 + $0x1b8] sm:$0xf]
    %v273 = vld [vmem:[#allocation5 + $0x1bc] sm:$0xf]
    %v274 = vld [vmem:[#allocation5 + $0x1c0] sm:$0xf]
    %v275 = vld [vmem:[#allocation5 + $0x1c4] sm:$0xf]
    %v276 = vld [vmem:[#allocation5 + $0x1c8] sm:$0xf]
    %v277 = vld [vmem:[#allocation5 + $0x1cc] sm:$0xf]
    %v278 = vld [vmem:[#allocation5 + $0x1d0] sm:$0xf]
    %v279 = vld [vmem:[#allocation5 + $0x1d4] sm:$0xf]
    %v280 = vld [vmem:[#allocation5 + $0x1d8] sm:$0xf]
    %v281 = vld [vmem:[#allocation5 + $0x1dc] sm:$0xf]
    %v282 = vld [vmem:[#allocation5 + $0x1e0] sm:$0xf]
    %v283 = vld [vmem:[#allocation5 + $0x1e4] sm:$0xf]
    %v284 = vld [vmem:[#allocation5 + $0x1e8] sm:$0xf]
    %v285 = vld [vmem:[#allocation5 + $0x1ec] sm:$0xf]
    %v286 = vld [vmem:[#allocation5 + $0x1f0] sm:$0xf]
    %v287 = vld [vmem:[#allocation5 + $0x1f4] sm:$0xf]
    %v288 = vld [vmem:[#allocation5 + $0x1f8] sm:$0xf]
    %v289 = vld [vmem:[#allocation5 + $0x1fc] sm:$0xf]
    %v290 = vld [vmem:[#allocation5 + $0x200] sm:$0xf]
    %v291 = vld [vmem:[#allocation5 + $0x204] sm:$0xf]
    %v292 = vld [vmem:[#allocation5 + $0x208] sm:$0xf]
    %v293 = vld [vmem:[#allocation5 + $0x20c] sm:$0xf]
    %v294 = vld [vmem:[#allocation5 + $0x210] sm:$0xf]
    %v295 = vld [vmem:[#allocation5 + $0x214] sm:$0xf]
    %v296 = vld [vmem:[#allocation5 + $0x218] sm:$0xf]
    %v297 = vld [vmem:[#allocation5 + $0x21c] sm:$0xf]
    %v298 = vld [vmem:[#allocation5 + $0x220] sm:$0xf]
    %v299 = vld [vmem:[#allocation5 + $0x224] sm:$0xf]
    %v300 = vld [vmem:[#allocation5 + $0x228] sm:$0xf]
    %v301 = vld [vmem:[#allocation5 + $0x22c] sm:$0xf]
    %v302 = vld [vmem:[#allocation5 + $0x230] sm:$0xf]
    %v303 = vld [vmem:[#allocation5 + $0x234] sm:$0xf]
    %v304 = vld [vmem:[#allocation5 + $0x238] sm:$0xf]
    %v305 = vld [vmem:[#allocation5 + $0x23c] sm:$0xf]
    %v450 = vunpack.c.l.b16 %v162
    %v451 = vunpack.c.l.b16 %v163
    %v452 = vunpack.c.l.b16 %v164
    %v453 = vunpack.c.l.b16 %v165
    %v454 = vunpack.c.l.b16 %v166
    %v455 = vunpack.c.l.b16 %v167
    %v456 = vunpack.c.l.b16 %v168
    %v457 = vunpack.c.l.b16 %v169
    %v458 = vunpack.c.l.b16 %v170
    %v459 = vunpack.c.l.b16 %v171
    %v460 = vunpack.c.l.b16 %v172
    %v461 = vunpack.c.l.b16 %v173
    %v462 = vunpack.c.l.b16 %v174
    %v463 = vunpack.c.l.b16 %v175
    %v464 = vunpack.c.l.b16 %v176
    %v465 = vunpack.c.l.b16 %v177
    %v466 = vunpack.c.l.b16 %v178
    %v467 = vunpack.c.l.b16 %v179
    %v468 = vunpack.c.l.b16 %v180
    %v469 = vunpack.c.l.b16 %v181
    %v470 = vunpack.c.l.b16 %v182
    %v471 = vunpack.c.l.b16 %v183
    %v472 = vunpack.c.l.b16 %v184
    %v473 = vunpack.c.l.b16 %v185
    %v474 = vunpack.c.l.b16 %v186
    %v475 = vunpack.c.l.b16 %v187
    %v476 = vunpack.c.l.b16 %v188
    %v477 = vunpack.c.l.b16 %v189
    %v478 = vunpack.c.l.b16 %v190
    %v479 = vunpack.c.l.b16 %v191
    %v480 = vunpack.c.l.b16 %v192
    %v481 = vunpack.c.l.b16 %v193
    %v482 = vunpack.c.l.b16 %v194
    %v483 = vunpack.c.l.b16 %v195
    %v484 = vunpack.c.l.b16 %v196
    %v485 = vunpack.c.l.b16 %v197
    %v486 = vunpack.c.l.b16 %v198
    %v487 = vunpack.c.l.b16 %v199
    %v488 = vunpack.c.l.b16 %v200
    %v489 = vunpack.c.l.b16 %v201
    %v490 = vunpack.c.l.b16 %v202
    %v491 = vunpack.c.l.b16 %v203
    %v492 = vunpack.c.l.b16 %v204
    %v493 = vunpack.c.l.b16 %v205
    %v494 = vunpack.c.l.b16 %v206
    %v495 = vunpack.c.l.b16 %v207
    %v496 = vunpack.c.l.b16 %v208
    %v497 = vunpack.c.l.b16 %v209
    %v498 = vunpack.c.l.b16 %v210
    %v499 = vunpack.c.l.b16 %v211
    %v500 = vunpack.c.l.b16 %v212
    %v501 = vunpack.c.l.b16 %v213
    %v502 = vunpack.c.l.b16 %v214
    %v503 = vunpack.c.l.b16 %v215
    %v504 = vunpack.c.l.b16 %v216
    %v505 = vunpack.c.l.b16 %v217
    %v506 = vunpack.c.l.b16 %v218
    %v507 = vunpack.c.l.b16 %v219
    %v508 = vunpack.c.l.b16 %v220
    %v509 = vunpack.c.l.b16 %v221
    %v510 = vunpack.c.l.b16 %v222
    %v511 = vunpack.c.l.b16 %v223
    %v512 = vunpack.c.l.b16 %v224
    %v513 = vunpack.c.l.b16 %v225
    %v514 = vunpack.c.l.b16 %v226
    %v515 = vunpack.c.l.b16 %v227
    %v516 = vunpack.c.l.b16 %v228
    %v517 = vunpack.c.l.b16 %v229
    %v518 = vunpack.c.l.b16 %v230
    %v519 = vunpack.c.l.b16 %v231
    %v520 = vunpack.c.l.b16 %v232
    %v521 = vunpack.c.l.b16 %v233
    %v522 = vunpack.c.l.b16 %v234
    %v523 = vunpack.c.l.b16 %v235
    %v524 = vunpack.c.l.b16 %v236
    %v525 = vunpack.c.l.b16 %v237
    %v526 = vunpack.c.l.b16 %v238
    %v527 = vunpack.c.l.b16 %v239
    %v528 = vunpack.c.l.b16 %v240
    %v529 = vunpack.c.l.b16 %v241
    %v530 = vunpack.c.l.b16 %v242
    %v531 = vunpack.c.l.b16 %v243
    %v532 = vunpack.c.l.b16 %v244
    %v533 = vunpack.c.l.b16 %v245
    %v534 = vunpack.c.l.b16 %v246
    %v535 = vunpack.c.l.b16 %v247
    %v536 = vunpack.c.l.b16 %v248
    %v537 = vunpack.c.l.b16 %v249
    %v538 = vunpack.c.l.b16 %v250
    %v539 = vunpack.c.l.b16 %v251
    %v540 = vunpack.c.l.b16 %v252
    %v541 = vunpack.c.l.b16 %v253
    %v542 = vunpack.c.l.b16 %v254
    %v543 = vunpack.c.l.b16 %v255
    %v544 = vunpack.c.l.b16 %v256
    %v545 = vunpack.c.l.b16 %v257
    %v546 = vunpack.c.l.b16 %v258
    %v547 = vunpack.c.l.b16 %v259
    %v548 = vunpack.c.l.b16 %v260
    %v549 = vunpack.c.l.b16 %v261
    %v550 = vunpack.c.l.b16 %v262
    %v551 = vunpack.c.l.b16 %v263
    %v552 = vunpack.c.l.b16 %v264
    %v553 = vunpack.c.l.b16 %v265
    %v554 = vunpack.c.l.b16 %v266
    %v555 = vunpack.c.l.b16 %v267
    %v556 = vunpack.c.l.b16 %v268
    %v557 = vunpack.c.l.b16 %v269
    %v558 = vunpack.c.l.b16 %v270
    %v559 = vunpack.c.l.b16 %v271
    %v560 = vunpack.c.l.b16 %v272
    %v561 = vunpack.c.l.b16 %v273
    %v562 = vunpack.c.l.b16 %v274
    %v563 = vunpack.c.l.b16 %v275
    %v564 = vunpack.c.l.b16 %v276
    %v565 = vunpack.c.l.b16 %v277
    %v566 = vunpack.c.l.b16 %v278
    %v567 = vunpack.c.l.b16 %v279
    %v568 = vunpack.c.l.b16 %v280
    %v569 = vunpack.c.l.b16 %v281
    %v570 = vunpack.c.l.b16 %v282
    %v571 = vunpack.c.l.b16 %v283
    %v572 = vunpack.c.l.b16 %v284
    %v573 = vunpack.c.l.b16 %v285
    %v574 = vunpack.c.l.b16 %v286
    %v575 = vunpack.c.l.b16 %v287
    %v576 = vunpack.c.l.b16 %v288
    %v577 = vunpack.c.l.b16 %v289
    %v578 = vunpack.c.l.b16 %v290
    %v579 = vunpack.c.l.b16 %v291
    %v580 = vunpack.c.l.b16 %v292
    %v581 = vunpack.c.l.b16 %v293
    %v582 = vunpack.c.l.b16 %v294
    %v583 = vunpack.c.l.b16 %v295
    %v584 = vunpack.c.l.b16 %v296
    %v585 = vunpack.c.l.b16 %v297
    %v586 = vunpack.c.l.b16 %v298
    %v587 = vunpack.c.l.b16 %v299
    %v588 = vunpack.c.l.b16 %v300
    %v589 = vunpack.c.l.b16 %v301
    %v590 = vunpack.c.l.b16 %v302
    %v591 = vunpack.c.l.b16 %v303
    %v592 = vunpack.c.l.b16 %v304
    %v593 = vunpack.c.l.b16 %v305
    %v594 = vpack.c.b16 %v451, %v450
    %v595 = vpack.c.b16 %v453, %v452
    %v596 = vpack.c.b16 %v455, %v454
    %v597 = vpack.c.b16 %v457, %v456
    %v598 = vpack.c.b16 %v459, %v458
    %v599 = vpack.c.b16 %v461, %v460
    %v600 = vpack.c.b16 %v463, %v462
    %v601 = vpack.c.b16 %v465, %v464
    %v602 = vpack.c.b16 %v467, %v466
    %v603 = vpack.c.b16 %v469, %v468
    %v604 = vpack.c.b16 %v471, %v470
    %v605 = vpack.c.b16 %v473, %v472
    %v606 = vpack.c.b16 %v475, %v474
    %v607 = vpack.c.b16 %v477, %v476
    %v608 = vpack.c.b16 %v479, %v478
    %v609 = vpack.c.b16 %v481, %v480
    %v610 = vpack.c.b16 %v483, %v482
    %v611 = vpack.c.b16 %v485, %v484
    %v612 = vpack.c.b16 %v487, %v486
    %v613 = vpack.c.b16 %v489, %v488
    %v614 = vpack.c.b16 %v491, %v490
    %v615 = vpack.c.b16 %v493, %v492
    %v616 = vpack.c.b16 %v495, %v494
    %v617 = vpack.c.b16 %v497, %v496
    %v618 = vpack.c.b16 %v499, %v498
    %v619 = vpack.c.b16 %v501, %v500
    %v620 = vpack.c.b16 %v503, %v502
    %v621 = vpack.c.b16 %v505, %v504
    %v622 = vpack.c.b16 %v507, %v506
    %v623 = vpack.c.b16 %v509, %v508
    %v624 = vpack.c.b16 %v511, %v510
    %v625 = vpack.c.b16 %v513, %v512
    %v626 = vpack.c.b16 %v515, %v514
    %v627 = vpack.c.b16 %v517, %v516
    %v628 = vpack.c.b16 %v519, %v518
    %v629 = vpack.c.b16 %v521, %v520
    %v630 = vpack.c.b16 %v523, %v522
    %v631 = vpack.c.b16 %v525, %v524
    %v632 = vpack.c.b16 %v527, %v526
    %v633 = vpack.c.b16 %v529, %v528
    %v634 = vpack.c.b16 %v531, %v530
    %v635 = vpack.c.b16 %v533, %v532
    %v636 = vpack.c.b16 %v535, %v534
    %v637 = vpack.c.b16 %v537, %v536
    %v638 = vpack.c.b16 %v539, %v538
    %v639 = vpack.c.b16 %v541, %v540
    %v640 = vpack.c.b16 %v543, %v542
    %v641 = vpack.c.b16 %v545, %v544
    %v642 = vpack.c.b16 %v547, %v546
    %v643 = vpack.c.b16 %v549, %v548
    %v644 = vpack.c.b16 %v551, %v550
    %v645 = vpack.c.b16 %v553, %v552
    %v646 = vpack.c.b16 %v555, %v554
    %v647 = vpack.c.b16 %v557, %v556
    %v648 = vpack.c.b16 %v559, %v558
    %v649 = vpack.c.b16 %v561, %v560
    %v650 = vpack.c.b16 %v563, %v562
    %v651 = vpack.c.b16 %v565, %v564
    %v652 = vpack.c.b16 %v567, %v566
    %v653 = vpack.c.b16 %v569, %v568
    %v654 = vpack.c.b16 %v571, %v570
    %v655 = vpack.c.b16 %v573, %v572
    %v656 = vpack.c.b16 %v575, %v574
    %v657 = vpack.c.b16 %v577, %v576
    %v658 = vpack.c.b16 %v579, %v578
    %v659 = vpack.c.b16 %v581, %v580
    %v660 = vpack.c.b16 %v583, %v582
    %v661 = vpack.c.b16 %v585, %v584
    %v662 = vpack.c.b16 %v587, %v586
    %v663 = vpack.c.b16 %v589, %v588
    %v664 = vpack.c.b16 %v591, %v590
    %v665 = vpack.c.b16 %v593, %v592
    %738 = vmatprep.subr.bf16.mxu0 0
    %739 = vmatpush1.bf16.msra.mxu0 %v594
    %740 = vmatprep.subr.bf16.mxu0 0
    %741 = vmatpush1.bf16.msra.mxu0 %v595
    %742 = vmatprep.subr.bf16.mxu0 0
    %743 = vmatpush1.bf16.msra.mxu0 %v596
    %744 = vmatprep.subr.bf16.mxu0 0
    %745 = vmatpush1.bf16.msra.mxu0 %v597
    %746 = vmatprep.subr.bf16.mxu0 0
    %747 = vmatpush1.bf16.msra.mxu0 %v598
    %748 = vmatprep.subr.bf16.mxu0 0
    %749 = vmatpush1.bf16.msra.mxu0 %v599
    %750 = vmatprep.subr.bf16.mxu0 0
    %751 = vmatpush1.bf16.msra.mxu0 %v600
    %752 = vmatprep.subr.bf16.mxu0 0
    %753 = vmatpush1.bf16.msra.mxu0 %v601
    %754 = vmatprep.subr.bf16.mxu0 0
    %755 = vmatpush1.bf16.msra.mxu0 %v602
    %756 = vmatprep.subr.bf16.mxu0 0
    %757 = vmatpush1.bf16.msra.mxu0 %v603
    %758 = vmatprep.subr.bf16.mxu0 0
    %759 = vmatpush1.bf16.msra.mxu0 %v604
    %760 = vmatprep.subr.bf16.mxu0 0
    %761 = vmatpush1.bf16.msra.mxu0 %v605
    %762 = vmatprep.subr.bf16.mxu0 0
    %763 = vmatpush1.bf16.msra.mxu0 %v606
    %764 = vmatprep.subr.bf16.mxu0 0
    %765 = vmatpush1.bf16.msra.mxu0 %v607
    %766 = vmatprep.subr.bf16.mxu0 0
    %767 = vmatpush1.bf16.msra.mxu0 %v608
    %768 = vmatprep.subr.bf16.mxu0 0
    %769 = vmatpush1.bf16.msra.mxu0 %v609
    %770 = vmatprep.mubr.bf16.mxu0 %v70
    %771 = vmatmul.mubr.bf16.gmra.mrb[0].mxu0 %v57
    %v772 = vpop.f32.mrb[0].mxu0
    %v773 = vadd.f32 0.0, %v772
    %v774 = vpop.f32.mrb[0].mxu0
    %v775 = vpop.f32.mrb[0].mxu0
    %v776 = vadd.f32 0.0, %v775
    %v777 = vpop.f32.mrb[0].mxu0
    %778 = vdwg.mxu0
    %779 = vmatprep.subr.bf16.mxu0 0
    %780 = vmatpush1.bf16.msra.mxu0 %v610
    %781 = vmatprep.subr.bf16.mxu0 0
    %782 = vmatpush1.bf16.msra.mxu0 %v611
    %783 = vmatprep.subr.bf16.mxu0 0
    %784 = vmatpush1.bf16.msra.mxu0 %v612
    %785 = vmatprep.subr.bf16.mxu0 0
    %786 = vmatpush1.bf16.msra.mxu0 %v613
    %787 = vmatprep.subr.bf16.mxu0 0
    %788 = vmatpush1.bf16.msra.mxu0 %v614
    %789 = vmatprep.subr.bf16.mxu0 0
    %790 = vmatpush1.bf16.msra.mxu0 %v615
    %791 = vmatprep.subr.bf16.mxu0 0
    %792 = vmatpush1.bf16.msra.mxu0 %v616
    %793 = vmatprep.subr.bf16.mxu0 0
    %794 = vmatpush1.bf16.msra.mxu0 %v617
    %795 = vmatprep.subr.bf16.mxu0 0
    %796 = vmatpush1.bf16.msra.mxu0 %v618
    %797 = vmatprep.subr.bf16.mxu0 0
    %798 = vmatpush1.bf16.msra.mxu0 %v619
    %799 = vmatprep.subr.bf16.mxu0 0
    %800 = vmatpush1.bf16.msra.mxu0 %v620
    %801 = vmatprep.subr.bf16.mxu0 0
    %802 = vmatpush1.bf16.msra.mxu0 %v621
    %803 = vmatprep.subr.bf16.mxu0 0
    %804 = vmatpush1.bf16.msra.mxu0 %v622
    %805 = vmatprep.subr.bf16.mxu0 0
    %806 = vmatpush1.bf16.msra.mxu0 %v623
    %807 = vmatprep.subr.bf16.mxu0 0
    %808 = vmatpush1.bf16.msra.mxu0 %v624
    %809 = vmatprep.subr.bf16.mxu0 0
    %810 = vmatpush1.bf16.msra.mxu0 %v625
    %811 = vmatprep.mubr.bf16.mxu0 %v96
    %812 = vmatmul.mubr.bf16.gmra.mrb[0].mxu0 %v83
    %v813 = vpop.f32.mrb[0].mxu0
    %v814 = vadd.f32 %v773, %v813
    %v815 = vpop.f32.mrb[0].mxu0
    %v816 = vpop.f32.mrb[0].mxu0
    %v817 = vadd.f32 %v776, %v816
    %v818 = vpop.f32.mrb[0].mxu0
    %819 = vdwg.mxu0
    %820 = vmatprep.subr.bf16.mxu0 0
    %821 = vmatpush1.bf16.msra.mxu0 %v626
    %822 = vmatprep.subr.bf16.mxu0 0
    %823 = vmatpush1.bf16.msra.mxu0 %v627
    %824 = vmatprep.subr.bf16.mxu0 0
    %825 = vmatpush1.bf16.msra.mxu0 %v628
    %826 = vmatprep.subr.bf16.mxu0 0
    %827 = vmatpush1.bf16.msra.mxu0 %v629
    %828 = vmatprep.subr.bf16.mxu0 0
    %829 = vmatpush1.bf16.msra.mxu0 %v630
    %830 = vmatprep.subr.bf16.mxu0 0
    %831 = vmatpush1.bf16.msra.mxu0 %v631
    %832 = vmatprep.subr.bf16.mxu0 0
    %833 = vmatpush1.bf16.msra.mxu0 %v632
    %834 = vmatprep.subr.bf16.mxu0 0
    %835 = vmatpush1.bf16.msra.mxu0 %v633
    %836 = vmatprep.subr.bf16.mxu0 0
    %837 = vmatpush1.bf16.msra.mxu0 %v634
    %838 = vmatprep.subr.bf16.mxu0 0
    %839 = vmatpush1.bf16.msra.mxu0 %v635
    %840 = vmatprep.subr.bf16.mxu0 0
    %841 = vmatpush1.bf16.msra.mxu0 %v636
    %842 = vmatprep.subr.bf16.mxu0 0
    %843 = vmatpush1.bf16.msra.mxu0 %v637
    %844 = vmatprep.subr.bf16.mxu0 0
    %845 = vmatpush1.bf16.msra.mxu0 %v638
    %846 = vmatprep.subr.bf16.mxu0 0
    %847 = vmatpush1.bf16.msra.mxu0 %v639
    %848 = vmatprep.subr.bf16.mxu0 0
    %849 = vmatpush1.bf16.msra.mxu0 %v640
    %850 = vmatprep.subr.bf16.mxu0 0
    %851 = vmatpush1.bf16.msra.mxu0 %v641
    %852 = vmatprep.mubr.bf16.mxu0 %v122
    %853 = vmatmul.mubr.bf16.gmra.mrb[0].mxu0 %v109
    %v854 = vpop.f32.mrb[0].mxu0
    %v855 = vadd.f32 %v814, %v854
    %v856 = vpop.f32.mrb[0].mxu0
    %v857 = vpop.f32.mrb[0].mxu0
    %v858 = vadd.f32 %v817, %v857
    %v859 = vpop.f32.mrb[0].mxu0
    %860 = vdwg.mxu0
    %861 = vmatprep.subr.bf16.mxu0 0
    %862 = vmatpush1.bf16.msra.mxu0 %v642
    %863 = vmatprep.subr.bf16.mxu0 0
    %864 = vmatpush1.bf16.msra.mxu0 %v643
    %865 = vmatprep.subr.bf16.mxu0 0
    %866 = vmatpush1.bf16.msra.mxu0 %v644
    %867 = vmatprep.subr.bf16.mxu0 0
    %868 = vmatpush1.bf16.msra.mxu0 %v645
    %869 = vmatprep.subr.bf16.mxu0 0
    %870 = vmatpush1.bf16.msra.mxu0 %v646
    %871 = vmatprep.subr.bf16.mxu0 0
    %872 = vmatpush1.bf16.msra.mxu0 %v647
    %873 = vmatprep.subr.bf16.mxu0 0
    %874 = vmatpush1.bf16.msra.mxu0 %v648
    %875 = vmatprep.subr.bf16.mxu0 0
    %876 = vmatpush1.bf16.msra.mxu0 %v649
    %877 = vmatprep.subr.bf16.mxu0 0
    %878 = vmatpush1.bf16.msra.mxu0 %v650
    %879 = vmatprep.subr.bf16.mxu0 0
    %880 = vmatpush1.bf16.msra.mxu0 %v651
    %881 = vmatprep.subr.bf16.mxu0 0
    %882 = vmatpush1.bf16.msra.mxu0 %v652
    %883 = vmatprep.subr.bf16.mxu0 0
    %884 = vmatpush1.bf16.msra.mxu0 %v653
    %885 = vmatprep.subr.bf16.mxu0 0
    %886 = vmatpush1.bf16.msra.mxu0 %v654
    %887 = vmatprep.subr.bf16.mxu0 0
    %888 = vmatpush1.bf16.msra.mxu0 %v655
    %889 = vmatprep.subr.bf16.mxu0 0
    %890 = vmatpush1.bf16.msra.mxu0 %v656
    %891 = vmatprep.subr.bf16.mxu0 0
    %892 = vmatpush1.bf16.msra.mxu0 %v657
    %893 = vmatprep.mubr.bf16.mxu0 %v148
    %894 = vmatmul.mubr.bf16.gmra.mrb[0].mxu0 %v135
    %v895 = vpop.f32.mrb[0].mxu0
    %v896 = vadd.f32 %v855, %v895
    %v897 = vpop.f32.mrb[0].mxu0
    %v898 = vpop.f32.mrb[0].mxu0
    %v899 = vadd.f32 %v858, %v898
    %v900 = vpop.f32.mrb[0].mxu0
    %901 = vdwg.mxu0
    %902 = vmatprep.subr.bf16.mxu0 0
    %903 = vmatpush1.bf16.msra.mxu0 %v658
    %904 = vmatprep.subr.bf16.mxu0 0
    %905 = vmatpush1.bf16.msra.mxu0 %v659
    %906 = vmatprep.subr.bf16.mxu0 0
    %907 = vmatpush1.bf16.msra.mxu0 %v660
    %908 = vmatprep.subr.bf16.mxu0 0
    %909 = vmatpush1.bf16.msra.mxu0 %v661
    %910 = vmatprep.subr.bf16.mxu0 0
    %911 = vmatpush1.bf16.msra.mxu0 %v662
    %912 = vmatprep.subr.bf16.mxu0 0
    %913 = vmatpush1.bf16.msra.mxu0 %v663
    %914 = vmatprep.subr.bf16.mxu0 0
    %915 = vmatpush1.bf16.msra.mxu0 %v664
    %916 = vmatprep.subr.bf16.mxu0 0
    %917 = vmatpush1.bf16.msra.mxu0 %v665
    %918 = vmatprep.subr.bf16.mxu0 0
    %919 = vmatpush1.bf16.msra.mxu0 0
    %920 = vmatprep.subr.bf16.mxu0 0
    %921 = vmatpush1.bf16.msra.mxu0 0
    %922 = vmatprep.subr.bf16.mxu0 0
    %923 = vmatpush1.bf16.msra.mxu0 0
    %924 = vmatprep.subr.bf16.mxu0 0
    %925 = vmatpush1.bf16.msra.mxu0 0
    %926 = vmatprep.subr.bf16.mxu0 0
    %927 = vmatpush1.bf16.msra.mxu0 0
    %928 = vmatprep.subr.bf16.mxu0 0
    %929 = vmatpush1.bf16.msra.mxu0 0
    %930 = vmatprep.subr.bf16.mxu0 0
    %931 = vmatpush1.bf16.msra.mxu0 0
    %932 = vmatprep.subr.bf16.mxu0 0
    %933 = vmatpush1.bf16.msra.mxu0 0
    %934 = vmatprep.mubr.bf16.mxu0 0
    %935 = vmatmul.mubr.bf16.gmra.mrb[0].mxu0 %v161
    %v936 = vpop.f32.mrb[0].mxu0
    %v937 = vadd.f32 %v896, %v936
    %v938 = vpop.f32.mrb[0].mxu0
    %v939 = vpop.f32.mrb[0].mxu0
    %v940 = vadd.f32 %v899, %v939
    %v941 = vpop.f32.mrb[0].mxu0
    %942 = vdwg.mxu0
    %943 = vst [vmem:[#allocation7] sm:$0xff] %v937
    %944 = vst [vmem:[#allocation7 + $0x8] sm:$0xff] %v940
    // Predicated region
    $region18: #{tpu_custom_call.1} parent=1 // pred_check
      _
    $region19: #{tpu_custom_call.1} parent=1 // pred_check_branch
      %946 = sbr.rel (0) target = $region21
    $region20: #{tpu_custom_call.1} parent=1 // pred_region
      %s948 = ssub.s32 256, 256
      %949 = vsyncadd [#allocation4], %s948
      %s950 = sshll.u32 [#allocation7], 4
      %s951 = int_to_ptr.vmem [resolvable:$true] %s950
      %956 = dma.vmem_to_hbm [thread:$0]  %s951, 256, %s2, [#allocation4], 128, 128, 8
    $region21: #{tpu_custom_call.1} parent=1 // pred_fallthru
      _
    // Predicated region
    $region22: #{tpu_custom_call.1} parent=1 // pred_check
      _
    $region23: #{tpu_custom_call.1} parent=1 // pred_check_branch
      %958 = sbr.rel (0) target = $region25
    $region24: #{tpu_custom_call.1} parent=1 // pred_region
      %959 = dma.done [#allocation4], 256
    $region25: #{tpu_custom_call.1} parent=1 // pred_fallthru
      _
    %960 = vsyncpa [#allocation3], 1
    %961 = vsyncpa [#allocation6], 1
    %962 = vsyncpa [#allocation4], 1

</llo_original>
